<compile_context>
chip_gen: v5e
topology: v5e:2x2
jax: 0.10.0
libtpu: 0.0.40
codegen_flags: <defaults>
</compile_context>

<pallas_src>
import math
import numpy as np
import jax
import jax.numpy as jnp
from jax.experimental import pallas as pl
from jax.experimental.pallas import tpu as pltpu


# ---------------------------------------------------------------------------
# Diffusion schedule buffers (same math as PointDiffusion.__init__, float64
# then cast to float32, computed with numpy -- pure host-side constants).
# ---------------------------------------------------------------------------
def linear_beta_schedule(timesteps):
    scale = 1000.0 / timesteps
    beta_start = scale * 0.0001
    beta_end = scale * 0.02
    return np.linspace(beta_start, beta_end, timesteps, dtype=np.float64)


def cosine_beta_schedule(timesteps, s=0.008):
    steps = timesteps + 1
    x = np.linspace(0, timesteps, steps, dtype=np.float64)
    alphas_cumprod = np.cos((x / timesteps + s) / (1 + s) * math.pi * 0.5) ** 2
    alphas_cumprod = alphas_cumprod / alphas_cumprod[0]
    betas = 1.0 - alphas_cumprod[1:] / alphas_cumprod[:-1]
    return np.clip(betas, 0, 0.99999)


def make_buffers(timesteps, beta_schedule="linear"):
    if beta_schedule == "linear":
        betas = linear_beta_schedule(timesteps)
    elif beta_schedule == "cosine":
        betas = cosine_beta_schedule(timesteps)
    else:
        raise NotImplementedError(beta_schedule)
    alphas = 1.0 - betas
    alphas_cumprod = np.cumprod(alphas, axis=0)
    alphas_cumprod_prev = np.concatenate([[1.0], alphas_cumprod[:-1]])
    posterior_variance = betas * (1.0 - alphas_cumprod_prev) / (1.0 - alphas_cumprod)
    f32 = lambda a: jnp.asarray(a, dtype=jnp.float32)
    return {
        "betas": f32(betas),
        "alphas_cumprod": f32(alphas_cumprod),
        "alphas_cumprod_prev": f32(alphas_cumprod_prev),
        "sqrt_alphas_cumprod": f32(np.sqrt(alphas_cumprod)),
        "sqrt_one_minus_alphas_cumprod": f32(np.sqrt(1.0 - alphas_cumprod)),
        "log_one_minus_alphas_cumprod": f32(np.log(1.0 - alphas_cumprod)),
        "sqrt_recip_alphas_cumprod": f32(np.sqrt(1.0 / alphas_cumprod)),
        "sqrt_recipm1_alphas_cumprod": f32(np.sqrt(1.0 / alphas_cumprod - 1.0)),
        "posterior_variance": f32(posterior_variance),
        "posterior_log_variance_clipped": f32(
            np.log(np.clip(posterior_variance, 1e-20, None))),
        "posterior_mean_coef1": f32(
            betas * np.sqrt(alphas_cumprod_prev) / (1.0 - alphas_cumprod)),
        "posterior_mean_coef2": f32(
            (1.0 - alphas_cumprod_prev) * np.sqrt(alphas) / (1.0 - alphas_cumprod)),
    }


# ---------------------------------------------------------------------------
# Synthetic denoiser parameters (deterministic init) + time embedding (glue).
# ---------------------------------------------------------------------------
def init_params(key, dim, hidden):
    k1, k2 = jax.random.split(key, 2)
    return {
        "w1": jax.random.normal(k1, (dim, hidden), dtype=jnp.float32) * 0.2,
        "b1": jnp.zeros((1, hidden), dtype=jnp.float32),
        "w2": jax.random.normal(k2, (hidden, dim), dtype=jnp.float32) * 0.2,
        "b2": jnp.zeros((1, dim), dtype=jnp.float32),
    }


def time_embedding(t, dim):
    half = dim // 2
    freqs = jnp.exp(-math.log(10000.0) * jnp.arange(half, dtype=jnp.float32)
                    / max(half - 1, 1))
    args = t.astype(jnp.float32)[:, None] * freqs[None, :]
    return jnp.concatenate([jnp.sin(args), jnp.cos(args)], axis=-1)  # (B, dim)


# ---------------------------------------------------------------------------
# Pallas kernel: q_sample + point-wise MLP denoiser + SSE reduction.
# Single invocation (no grid). Operands (all full-array, no index_maps):
#   s_ref  : SMEM (2B + D,) f32  = [ca_0..ca_{B-1}, cb_0..cb_{B-1}, b2_0..b2_{D-1}]
#   xz_ref : VMEM (2D, BN)       = [x0 ; noise], channels-first, lane-dense
#   wb_ref : VMEM (H, 2D + B)    = [W1^T | W2 | (b1 + temb)^T]
#   sse_ref: SMEM (1, 1) output  = sum of squared errors over all B*N*D elems
# Column j of the BN lane axis belongs to batch j // N (row-major reshape of
# (B, N, D) -- this mapping is shared by xz, ca/cb and bt; do not change one
# without the others).
# ---------------------------------------------------------------------------
def p_losses_kernel(s_ref, xz_ref, wb_ref, sse_ref):
    two_d, BN = xz_ref.shape
    D = two_d // 2
    H = wb_ref.shape[0]
    B = wb_ref.shape[1] - 2 * D
    N = BN // B

    xz = xz_ref[...]                       # (2D, BN) -- one f32 vreg
    x = xz[:D, :]                          # (D, BN)
    nz = xz[D:, :]                         # (D, BN)

    wb = wb_ref[...]                       # (H, 2D + B)
    w1t = wb[:, :D]                        # (H, D)  = W1^T
    w2 = wb[:, D:2 * D]                    # (H, D)  = W2
    bt = wb[:, 2 * D:]                     # (H, B)  = (b1 + temb)^T

    # Rebuild per-column diffusion coefficients and bias+temb slab in-kernel
    # from SMEM scalars / the tiny (H, B) bt columns. B is static and tiny,
    # so this is an unrolled chain of selects (batch b overwrites cols >= b*N).
    col = jax.lax.broadcasted_iota(jnp.int32, (1, BN), 1)
    ca_row = jnp.full((1, BN), s_ref[0], dtype=jnp.float32)
    cb_row = jnp.full((1, BN), s_ref[B], dtype=jnp.float32)
    h = jnp.broadcast_to(bt[:, 0:1], (H, BN))
    for b in range(1, B):
        in_b = col >= (b * N)
        ca_row = jnp.where(in_b, s_ref[b], ca_row)
        cb_row = jnp.where(in_b, s_ref[B + b], cb_row)
        h = jnp.where(in_b, bt[:, b:b + 1], h)

    # q_sample: x_t = sqrt(acp[t]) * x_0 + sqrt(1 - acp[t]) * noise
    x_t = ca_row * x + cb_row * nz                                  # (D, BN)

    # layer 1 (contraction K = D = 4): unrolled VPU rank-1 accumulation.
    for d in range(D):                       # static unroll, D tiny
        h = h + w1t[:, d:d + 1] * x_t[d:d + 1, :]
    h = jnp.maximum(h, 0.0)                                         # (H, BN)

    # layer 2 (H -> D) fused with residual + squared error. Per output
    # channel: VPU multiply + sublane (axis-0) reduce; squared error is
    # accumulated lane-dense and cross-lane-reduced exactly once at the end.
    sq = jnp.zeros((1, BN), dtype=jnp.float32)
    for d in range(D):                       # static unroll, D tiny
        pred_d = jnp.sum(w2[:, d:d + 1] * h, axis=0, keepdims=True)  # (1, BN)
        err_d = (pred_d + s_ref[2 * B + d]) - nz[d:d + 1, :]
        sq = sq + err_d * err_d
    sse_ref[0, 0] = jnp.sum(sq)              # single cross-lane XLU reduce


def point_diffusion_loss(x0, t, noise, temb, params, buffers):
    B, N, D = x0.shape
    H = params["w1"].shape[1]
    BN = B * N

    # extract(): per-batch coefficients at timestep t -> SMEM scalars.
    ca = buffers["sqrt_alphas_cumprod"][t]                       # (B,)
    cb = buffers["sqrt_one_minus_alphas_cumprod"][t]             # (B,)
    b2 = params["b2"].reshape(D)                                 # (D,)
    scal = jnp.concatenate([ca, cb, b2]).astype(jnp.float32)     # (2B + D,)

    # Layout plumbing: channels-first lane-dense slabs; column j of the BN
    # axis belongs to batch j // N (row-major reshape of (B, N, D)).
    xz = jnp.concatenate(
        [x0.reshape(BN, D).T, noise.reshape(BN, D).T], axis=0)   # (2D, BN)

    # One weight slab: W1^T | W2 | (b1 + temb)^T  -> single VMEM DMA.
    bt_cols = (params["b1"] + temb).T                            # (H, B)
    wb = jnp.concatenate([params["w1"].T, params["w2"], bt_cols],
                         axis=1)                                 # (H, 2D + B)

    sse = pl.pallas_call(
        p_losses_kernel,
        out_shape=jax.ShapeDtypeStruct((1, 1), jnp.float32),
        in_specs=[
            pl.BlockSpec(memory_space=pltpu.MemorySpace.SMEM),   # scalars
            pl.BlockSpec(memory_space=pltpu.MemorySpace.VMEM),   # xz slab
            pl.BlockSpec(memory_space=pltpu.MemorySpace.VMEM),   # weight slab
        ],
        out_specs=pl.BlockSpec(memory_space=pltpu.MemorySpace.SMEM),
    )(scal, xz, wb)

    # F.mse_loss(..., reduction='mean') over all B*N*D elements.
    return sse[0, 0] / (B * N * D)


# Pure-JAX reference for correctness check.
def reference_loss(x0, t, noise, temb, params, buffers):
    ca = buffers["sqrt_alphas_cumprod"][t][:, None, None]
    cb = buffers["sqrt_one_minus_alphas_cumprod"][t][:, None, None]
    x_t = ca * x0 + cb * noise
    h = (jnp.einsum("bnd,dh->bnh", x_t, params["w1"],
                    precision=jax.lax.Precision.HIGHEST)
         + params["b1"] + temb[:, None, :])
    h = jnp.maximum(h, 0.0)
    pred = jnp.einsum("bnh,hd->bnd", h, params["w2"],
                      precision=jax.lax.Precision.HIGHEST) + params["b2"]
    return jnp.mean((pred - noise) ** 2)


if __name__ == "__main__":
    B, N, D, H, T = 2, 64, 4, 32, 100

    key = jax.random.PRNGKey(0)
    k_x, k_t, k_n, k_p = jax.random.split(key, 4)

    x0 = jax.random.normal(k_x, (B, N, D), dtype=jnp.float32)
    # forward(): t = randint(0, num_timesteps, (B,))
    t = jax.random.randint(k_t, (B,), 0, T)
    # p_losses()/q_sample(): noise = randn_like(x_0)
    noise = jax.random.normal(k_n, (B, N, D), dtype=jnp.float32)

    params = init_params(k_p, D, H)
    buffers = make_buffers(T, beta_schedule="linear")
    temb = time_embedding(t, H)

    loss = point_diffusion_loss(x0, t, noise, temb, params, buffers)
    loss = jax.block_until_ready(loss)

    ref = reference_loss(x0, t, noise, temb, params, buffers)
    assert np.allclose(np.asarray(loss), np.asarray(ref), rtol=1e-4, atol=1e-5), (
        float(loss), float(ref))

    # TODO(synk): sampling loop (p_sample over reversed timesteps) and the
    # 'l1' loss variant are not exercised by forward(); not implemented here.
    print("KERNEL_OK")
</pallas_src>

<mosaic_0001>
module attributes {stable_mosaic.version = 11 : i64} {
  func.func @p_losses_kernel(%arg0: memref<8xf32, #tpu.memory_space<smem>>, %arg1: memref<8x128xf32, #tpu.memory_space<vmem>>, %arg2: memref<32x10xf32, #tpu.memory_space<vmem>>, %arg3: memref<1x1xf32, #tpu.memory_space<smem>>) attributes {dimension_semantics = [], scalar_prefetch = 0 : i64, scratch_operands = 0 : i64, tpu.core_type = #tpu.core_type<tc>} {
    %c0 = arith.constant 0 : index
    %c0_0 = arith.constant 0 : index
    %0 = vector.load %arg1[%c0, %c0_0] : memref<8x128xf32, #tpu.memory_space<vmem>>, vector<8x128xf32>
    %1 = vector.extract_strided_slice %0 {offsets = [0, 0], sizes = [4, 128], strides = [1, 1]} : vector<8x128xf32> to vector<4x128xf32>
    %2 = vector.extract_strided_slice %0 {offsets = [4, 0], sizes = [4, 128], strides = [1, 1]} : vector<8x128xf32> to vector<4x128xf32>
    %c0_1 = arith.constant 0 : index
    %c0_2 = arith.constant 0 : index
    %3 = vector.load %arg2[%c0_1, %c0_2] : memref<32x10xf32, #tpu.memory_space<vmem>>, vector<32x10xf32>
    %4 = vector.extract_strided_slice %3 {offsets = [0, 0], sizes = [32, 4], strides = [1, 1]} : vector<32x10xf32> to vector<32x4xf32>
    %5 = vector.extract_strided_slice %3 {offsets = [0, 4], sizes = [32, 4], strides = [1, 1]} : vector<32x10xf32> to vector<32x4xf32>
    %6 = vector.extract_strided_slice %3 {offsets = [0, 8], sizes = [32, 2], strides = [1, 1]} : vector<32x10xf32> to vector<32x2xf32>
    %7 = tpu.iota {dimensions = array<i32: 1>} : vector<1x128xi32>
    %c0_3 = arith.constant 0 : index
    %8 = memref.load %arg0[%c0_3] : memref<8xf32, #tpu.memory_space<smem>>
    %9 = vector.broadcast %8 : f32 to vector<1x128xf32>
    %c2 = arith.constant 2 : index
    %10 = memref.load %arg0[%c2] : memref<8xf32, #tpu.memory_space<smem>>
    %11 = vector.broadcast %10 : f32 to vector<1x128xf32>
    %12 = vector.extract_strided_slice %6 {offsets = [0, 0], sizes = [32, 1], strides = [1, 1]} : vector<32x2xf32> to vector<32x1xf32>
    %13 = vector.shape_cast %12 : vector<32x1xf32> to vector<32x1xf32>
    %14 = vector.broadcast %13 : vector<32x1xf32> to vector<32x128xf32>
    %c64_i32 = arith.constant 64 : i32
    %15 = vector.broadcast %c64_i32 : i32 to vector<1x128xi32>
    %16 = arith.cmpi sge, %7, %15 : vector<1x128xi32>
    %c1 = arith.constant 1 : index
    %17 = memref.load %arg0[%c1] : memref<8xf32, #tpu.memory_space<smem>>
    %18 = vector.broadcast %17 : f32 to vector<1x128xf32>
    %19 = arith.select %16, %18, %9 : vector<1x128xi1>, vector<1x128xf32>
    %c3 = arith.constant 3 : index
    %20 = memref.load %arg0[%c3] : memref<8xf32, #tpu.memory_space<smem>>
    %21 = vector.broadcast %20 : f32 to vector<1x128xf32>
    %22 = arith.select %16, %21, %11 : vector<1x128xi1>, vector<1x128xf32>
    %23 = vector.extract_strided_slice %6 {offsets = [0, 1], sizes = [32, 1], strides = [1, 1]} : vector<32x2xf32> to vector<32x1xf32>
    %24 = vector.shape_cast %16 : vector<1x128xi1> to vector<1x128xi1>
    %25 = vector.broadcast %24 : vector<1x128xi1> to vector<32x128xi1>
    %26 = vector.shape_cast %23 : vector<32x1xf32> to vector<32x1xf32>
    %27 = vector.broadcast %26 : vector<32x1xf32> to vector<32x128xf32>
    %28 = arith.select %25, %27, %14 : vector<32x128xi1>, vector<32x128xf32>
    %29 = vector.broadcast %19 : vector<1x128xf32> to vector<4x128xf32>
    %30 = arith.mulf %29, %1 : vector<4x128xf32>
    %31 = vector.broadcast %22 : vector<1x128xf32> to vector<4x128xf32>
    %32 = arith.mulf %31, %2 : vector<4x128xf32>
    %33 = arith.addf %30, %32 : vector<4x128xf32>
    %34 = vector.extract_strided_slice %4 {offsets = [0, 0], sizes = [32, 1], strides = [1, 1]} : vector<32x4xf32> to vector<32x1xf32>
    %35 = vector.extract_strided_slice %33 {offsets = [0, 0], sizes = [1, 128], strides = [1, 1]} : vector<4x128xf32> to vector<1x128xf32>
    %36 = vector.broadcast %34 : vector<32x1xf32> to vector<32x128xf32>
    %37 = vector.broadcast %35 : vector<1x128xf32> to vector<32x128xf32>
    %38 = arith.mulf %36, %37 : vector<32x128xf32>
    %39 = arith.addf %28, %38 : vector<32x128xf32>
    %40 = vector.extract_strided_slice %4 {offsets = [0, 1], sizes = [32, 1], strides = [1, 1]} : vector<32x4xf32> to vector<32x1xf32>
    %41 = vector.extract_strided_slice %33 {offsets = [1, 0], sizes = [1, 128], strides = [1, 1]} : vector<4x128xf32> to vector<1x128xf32>
    %42 = vector.broadcast %40 : vector<32x1xf32> to vector<32x128xf32>
    %43 = vector.broadcast %41 : vector<1x128xf32> to vector<32x128xf32>
    %44 = arith.mulf %42, %43 : vector<32x128xf32>
    %45 = arith.addf %39, %44 : vector<32x128xf32>
    %46 = vector.extract_strided_slice %4 {offsets = [0, 2], sizes = [32, 1], strides = [1, 1]} : vector<32x4xf32> to vector<32x1xf32>
    %47 = vector.extract_strided_slice %33 {offsets = [2, 0], sizes = [1, 128], strides = [1, 1]} : vector<4x128xf32> to vector<1x128xf32>
    %48 = vector.broadcast %46 : vector<32x1xf32> to vector<32x128xf32>
    %49 = vector.broadcast %47 : vector<1x128xf32> to vector<32x128xf32>
    %50 = arith.mulf %48, %49 : vector<32x128xf32>
    %51 = arith.addf %45, %50 : vector<32x128xf32>
    %52 = vector.extract_strided_slice %4 {offsets = [0, 3], sizes = [32, 1], strides = [1, 1]} : vector<32x4xf32> to vector<32x1xf32>
    %53 = vector.extract_strided_slice %33 {offsets = [3, 0], sizes = [1, 128], strides = [1, 1]} : vector<4x128xf32> to vector<1x128xf32>
    %54 = vector.broadcast %52 : vector<32x1xf32> to vector<32x128xf32>
    %55 = vector.broadcast %53 : vector<1x128xf32> to vector<32x128xf32>
    %56 = arith.mulf %54, %55 : vector<32x128xf32>
    %57 = arith.addf %51, %56 : vector<32x128xf32>
    %cst = arith.constant 0.000000e+00 : f32
    %58 = vector.broadcast %cst : f32 to vector<32x128xf32>
    %59 = arith.maximumf %57, %58 : vector<32x128xf32>
    %cst_4 = arith.constant 0.000000e+00 : f32
    %60 = vector.broadcast %cst_4 : f32 to vector<1x128xf32>
    %61 = vector.extract_strided_slice %5 {offsets = [0, 0], sizes = [32, 1], strides = [1, 1]} : vector<32x4xf32> to vector<32x1xf32>
    %62 = vector.broadcast %61 : vector<32x1xf32> to vector<32x128xf32>
    %63 = arith.mulf %62, %59 : vector<32x128xf32>
    %cst_5 = arith.constant dense<0.000000e+00> : vector<128xf32>
    %64 = vector.multi_reduction <add>, %63, %cst_5 [0] : vector<32x128xf32> to vector<128xf32>
    %65 = vector.shape_cast %64 : vector<128xf32> to vector<1x128xf32>
    %c4 = arith.constant 4 : index
    %66 = memref.load %arg0[%c4] : memref<8xf32, #tpu.memory_space<smem>>
    %67 = vector.broadcast %66 : f32 to vector<1x128xf32>
    %68 = arith.addf %65, %67 : vector<1x128xf32>
    %69 = vector.extract_strided_slice %2 {offsets = [0, 0], sizes = [1, 128], strides = [1, 1]} : vector<4x128xf32> to vector<1x128xf32>
    %70 = arith.subf %68, %69 : vector<1x128xf32>
    %71 = arith.mulf %70, %70 : vector<1x128xf32>
    %72 = arith.addf %60, %71 : vector<1x128xf32>
    %73 = vector.extract_strided_slice %5 {offsets = [0, 1], sizes = [32, 1], strides = [1, 1]} : vector<32x4xf32> to vector<32x1xf32>
    %74 = vector.broadcast %73 : vector<32x1xf32> to vector<32x128xf32>
    %75 = arith.mulf %74, %59 : vector<32x128xf32>
    %cst_6 = arith.constant dense<0.000000e+00> : vector<128xf32>
    %76 = vector.multi_reduction <add>, %75, %cst_6 [0] : vector<32x128xf32> to vector<128xf32>
    %77 = vector.shape_cast %76 : vector<128xf32> to vector<1x128xf32>
    %c5 = arith.constant 5 : index
    %78 = memref.load %arg0[%c5] : memref<8xf32, #tpu.memory_space<smem>>
    %79 = vector.broadcast %78 : f32 to vector<1x128xf32>
    %80 = arith.addf %77, %79 : vector<1x128xf32>
    %81 = vector.extract_strided_slice %2 {offsets = [1, 0], sizes = [1, 128], strides = [1, 1]} : vector<4x128xf32> to vector<1x128xf32>
    %82 = arith.subf %80, %81 : vector<1x128xf32>
    %83 = arith.mulf %82, %82 : vector<1x128xf32>
    %84 = arith.addf %72, %83 : vector<1x128xf32>
    %85 = vector.extract_strided_slice %5 {offsets = [0, 2], sizes = [32, 1], strides = [1, 1]} : vector<32x4xf32> to vector<32x1xf32>
    %86 = vector.broadcast %85 : vector<32x1xf32> to vector<32x128xf32>
    %87 = arith.mulf %86, %59 : vector<32x128xf32>
    %cst_7 = arith.constant dense<0.000000e+00> : vector<128xf32>
    %88 = vector.multi_reduction <add>, %87, %cst_7 [0] : vector<32x128xf32> to vector<128xf32>
    %89 = vector.shape_cast %88 : vector<128xf32> to vector<1x128xf32>
    %c6 = arith.constant 6 : index
    %90 = memref.load %arg0[%c6] : memref<8xf32, #tpu.memory_space<smem>>
    %91 = vector.broadcast %90 : f32 to vector<1x128xf32>
    %92 = arith.addf %89, %91 : vector<1x128xf32>
    %93 = vector.extract_strided_slice %2 {offsets = [2, 0], sizes = [1, 128], strides = [1, 1]} : vector<4x128xf32> to vector<1x128xf32>
    %94 = arith.subf %92, %93 : vector<1x128xf32>
    %95 = arith.mulf %94, %94 : vector<1x128xf32>
    %96 = arith.addf %84, %95 : vector<1x128xf32>
    %97 = vector.extract_strided_slice %5 {offsets = [0, 3], sizes = [32, 1], strides = [1, 1]} : vector<32x4xf32> to vector<32x1xf32>
    %98 = vector.broadcast %97 : vector<32x1xf32> to vector<32x128xf32>
    %99 = arith.mulf %98, %59 : vector<32x128xf32>
    %cst_8 = arith.constant dense<0.000000e+00> : vector<128xf32>
    %100 = vector.multi_reduction <add>, %99, %cst_8 [0] : vector<32x128xf32> to vector<128xf32>
    %101 = vector.shape_cast %100 : vector<128xf32> to vector<1x128xf32>
    %c7 = arith.constant 7 : index
    %102 = memref.load %arg0[%c7] : memref<8xf32, #tpu.memory_space<smem>>
    %103 = vector.broadcast %102 : f32 to vector<1x128xf32>
    %104 = arith.addf %101, %103 : vector<1x128xf32>
    %105 = vector.extract_strided_slice %2 {offsets = [3, 0], sizes = [1, 128], strides = [1, 1]} : vector<4x128xf32> to vector<1x128xf32>
    %106 = arith.subf %104, %105 : vector<1x128xf32>
    %107 = arith.mulf %106, %106 : vector<1x128xf32>
    %108 = arith.addf %96, %107 : vector<1x128xf32>
    %109 = vector.shape_cast %108 : vector<1x128xf32> to vector<1x1x128xf32>
    %cst_9 = arith.constant dense<0.000000e+00> : vector<1xf32>
    %110 = vector.multi_reduction <add>, %109, %cst_9 [1, 2] : vector<1x1x128xf32> to vector<1xf32>
    %111 = vector.shape_cast %110 : vector<1xf32> to vector<1x1x1xf32>
    %112 = vector.extract %111[0, 0, 0] : f32 from vector<1x1x1xf32>
    %c0_10 = arith.constant 0 : index
    %c0_11 = arith.constant 0 : index
    %113 = memref.load %arg3[%c0_10, %c0_11] : memref<1x1xf32, #tpu.memory_space<smem>>
    memref.store %112, %arg3[%c0_10, %c0_11] : memref<1x1xf32, #tpu.memory_space<smem>>
    return
  }
}

</mosaic_0001>

<llo_original>
// kernel: tpu_custom_call.1
$region0: #{tpu_custom_call.1}
  #allocation0 [shape = 'u32[]', space=smem, size = 0x4, offset = 0x4, fixed_abs, tag = 'smem constant byte address 0x4 - core index']
  #allocation1 [shape = 'u32[72,128]{1,0:T(1,128)}', space=vmem, size = 0x9000, scoped, tag = 'internal scratch']
  %s0 = inlined_call_operand.vmem [shape: f32[8], index: 0, kind: input, shape index: {}]
  %s1 = inlined_call_operand.vmem [shape: f32[8,128], index: 1, kind: input, shape index: {}]
  %s2 = inlined_call_operand.vmem [shape: f32[32,10], index: 2, kind: input, shape index: {}]
  %s3 = inlined_call_operand.hbm [shape: f32[1,1], index: 3, kind: output, shape index: {}]
  %s4 = sld [smem:[#allocation0]]
  $region26: #{tpu_custom_call.1} parent=0
    _
  %s6 = ssub.s32 1, %s4
  %s7 = scalar_select 0, %s6, %s4
  $region1: #{tpu_custom_call.1} parent=0
    #allocation2 [shape = 'u8[512]{0}', space=smem, size = 0x200, scoped, tag = 'input window, operand 0, single buffered']
    #allocation3 [shape = 's32[1]{0}', space=sflag, size = 0x4, scoped, tag = 'scoped memory for tpu_custom_call.1']
    #allocation4 [shape = 's32[1]{0}', space=sflag, size = 0x4, scoped, tag = 'scoped memory for tpu_custom_call.1']
    #allocation5 [shape = 'u8[512]{0}', space=smem, size = 0x200, scoped, tag = 'output window, operand 0, single buffered']
    %8 = vsyncpa [#allocation4], 0
    %9 = vsyncpa [#allocation3], 0
    // Predicated region
    $region2: #{tpu_custom_call.1} parent=1 // pred_check
      _
    $region3: #{tpu_custom_call.1} parent=1 // pred_check_branch
      %11 = sbr.rel (0) target = $region5
    $region4: #{tpu_custom_call.1} parent=1 // pred_region
      %13 = vsyncadd [#allocation4], 0
      %s15 = sshll.u32 %s0, 4
      %s16 = int_to_ptr.vmem [resolvable:$true] %s15
      %18 = dma.vmem_to_smem %s16, 16, [#allocation2], [#allocation4]
    $region5: #{tpu_custom_call.1} parent=1 // pred_fallthru
      _
    // Predicated region
    $region6: #{tpu_custom_call.1} parent=1 // pred_check
      _
    $region7: #{tpu_custom_call.1} parent=1 // pred_check_branch
      %20 = sbr.rel (0) target = $region9
    $region8: #{tpu_custom_call.1} parent=1 // pred_region
      _
    $region9: #{tpu_custom_call.1} parent=1 // pred_fallthru
      _
    // Predicated region
    $region10: #{tpu_custom_call.1} parent=1 // pred_check
      _
    $region11: #{tpu_custom_call.1} parent=1 // pred_check_branch
      %22 = sbr.rel (0) target = $region13
    $region12: #{tpu_custom_call.1} parent=1 // pred_region
      _
    $region13: #{tpu_custom_call.1} parent=1 // pred_fallthru
      _
    // Predicated region
    $region14: #{tpu_custom_call.1} parent=1 // pred_check
      _
    $region15: #{tpu_custom_call.1} parent=1 // pred_check_branch
      %24 = sbr.rel (0) target = $region17
    $region16: #{tpu_custom_call.1} parent=1 // pred_region
      %26 = dma.done [#allocation4], 16
    $region17: #{tpu_custom_call.1} parent=1 // pred_fallthru
      _
    %27 = sfence
    %v28 = vld [vmem:[%s1] sm:$0xff]
    %v29 = vld [vmem:[%s2] sm:$0xff]
    %v30 = vld [vmem:[%s2 + $0x8] sm:$0xff]
    %v31 = vld [vmem:[%s2 + $0x10] sm:$0xff]
    %v32 = vld [vmem:[%s2 + $0x18] sm:$0xff]
    %v33 = vlaneseq
    %v34 = vand.u32 %v33, 127
    %s35 = sld [smem:[#allocation2]]
    %v36 = vstv %s35
    %s37 = sld [smem:[#allocation2 + $0x2]]
    %v38 = vstv %s37
    %40 = vset.pattern.permute.xlu0 8
    %41 = vperm.xlu0 %40, %v29
    %v42 = vpop.permute.xlu0 %41
    %45 = vset.pattern.permute.xlu0 8
    %46 = vperm.xlu0 %45, %v30
    %v47 = vpop.permute.xlu0 %46
    %50 = vset.pattern.permute.xlu0 8
    %51 = vperm.xlu0 %50, %v31
    %v52 = vpop.permute.xlu0 %51
    %55 = vset.pattern.permute.xlu0 8
    %56 = vperm.xlu0 %55, %v32
    %v57 = vpop.permute.xlu0 %56
    %vm59 = vcmp.ge.s32.totalorder %v34, 64
    %s60 = sld [smem:[#allocation2 + $0x1]]
    %v61 = vstv %s60
    %v62 = vsel %vm59, %v61, %v36
    %s63 = sld [smem:[#allocation2 + $0x3]]
    %v64 = vstv %s63
    %v65 = vsel %vm59, %v64, %v38
    %v66 = vsel %vm59, 1, 0
    %vm67 = vcmp.eq.s32.totalorder %v66, 1
    %68 = vset.pattern.permute.xlu0 9
    %69 = vperm.xlu0 %68, %v29
    %v70 = vpop.permute.xlu0 %69
    %72 = vset.pattern.permute.xlu0 9
    %73 = vperm.xlu0 %72, %v30
    %v74 = vpop.permute.xlu0 %73
    %76 = vset.pattern.permute.xlu0 9
    %77 = vperm.xlu0 %76, %v31
    %v78 = vpop.permute.xlu0 %77
    %80 = vset.pattern.permute.xlu0 9
    %81 = vperm.xlu0 %80, %v32
    %v82 = vpop.permute.xlu0 %81
    %v84 = vsel %vm67, %v70, %v42
    %v85 = vsel %vm67, %v74, %v47
    %v86 = vsel %vm67, %v78, %v52
    %v87 = vsel %vm67, %v82, %v57
    %v88 = vmul.f32 %v62, %v28
    %v89 = vmul.f32 %v65, %v28
    %v91 = vrot.slane %v89, 4
    %v93 = vadd.f32 %v88, %v91
    %94 = vset.pattern.permute.xlu0 0
    %95 = vperm.xlu0 %94, %v29
    %v96 = vpop.permute.xlu0 %95
    %98 = vset.pattern.permute.xlu0 0
    %99 = vperm.xlu0 %98, %v30
    %v100 = vpop.permute.xlu0 %99
    %102 = vset.pattern.permute.xlu0 0
    %103 = vperm.xlu0 %102, %v31
    %v104 = vpop.permute.xlu0 %103
    %106 = vset.pattern.permute.xlu0 0
    %107 = vperm.xlu0 %106, %v32
    %v108 = vpop.permute.xlu0 %107
    %v110 = vperm.slane %v93, 0
    %v111 = vmul.f32 %v96, %v110
    %v112 = vmul.f32 %v100, %v110
    %v113 = vmul.f32 %v104, %v110
    %v114 = vmul.f32 %v108, %v110
    %v115 = vadd.f32 %v84, %v111
    %v116 = vadd.f32 %v85, %v112
    %v117 = vadd.f32 %v86, %v113
    %v118 = vadd.f32 %v87, %v114
    %119 = vset.pattern.permute.xlu0 1
    %120 = vperm.xlu0 %119, %v29
    %v121 = vpop.permute.xlu0 %120
    %123 = vset.pattern.permute.xlu0 1
    %124 = vperm.xlu0 %123, %v30
    %v125 = vpop.permute.xlu0 %124
    %127 = vset.pattern.permute.xlu0 1
    %128 = vperm.xlu0 %127, %v31
    %v129 = vpop.permute.xlu0 %128
    %131 = vset.pattern.permute.xlu0 1
    %132 = vperm.xlu0 %131, %v32
    %v133 = vpop.permute.xlu0 %132
    %v135 = vperm.slane %v93, 1
    %v136 = vmul.f32 %v121, %v135
    %v137 = vmul.f32 %v125, %v135
    %v138 = vmul.f32 %v129, %v135
    %v139 = vmul.f32 %v133, %v135
    %v140 = vadd.f32 %v115, %v136
    %v141 = vadd.f32 %v116, %v137
    %v142 = vadd.f32 %v117, %v138
    %v143 = vadd.f32 %v118, %v139
    %144 = vset.pattern.permute.xlu0 2
    %145 = vperm.xlu0 %144, %v29
    %v146 = vpop.permute.xlu0 %145
    %148 = vset.pattern.permute.xlu0 2
    %149 = vperm.xlu0 %148, %v30
    %v150 = vpop.permute.xlu0 %149
    %152 = vset.pattern.permute.xlu0 2
    %153 = vperm.xlu0 %152, %v31
    %v154 = vpop.permute.xlu0 %153
    %156 = vset.pattern.permute.xlu0 2
    %157 = vperm.xlu0 %156, %v32
    %v158 = vpop.permute.xlu0 %157
    %v160 = vperm.slane %v93, 2
    %v161 = vmul.f32 %v146, %v160
    %v162 = vmul.f32 %v150, %v160
    %v163 = vmul.f32 %v154, %v160
    %v164 = vmul.f32 %v158, %v160
    %v165 = vadd.f32 %v140, %v161
    %v166 = vadd.f32 %v141, %v162
    %v167 = vadd.f32 %v142, %v163
    %v168 = vadd.f32 %v143, %v164
    %169 = vset.pattern.permute.xlu0 3
    %170 = vperm.xlu0 %169, %v29
    %v171 = vpop.permute.xlu0 %170
    %173 = vset.pattern.permute.xlu0 3
    %174 = vperm.xlu0 %173, %v30
    %v175 = vpop.permute.xlu0 %174
    %177 = vset.pattern.permute.xlu0 3
    %178 = vperm.xlu0 %177, %v31
    %v179 = vpop.permute.xlu0 %178
    %181 = vset.pattern.permute.xlu0 3
    %182 = vperm.xlu0 %181, %v32
    %v183 = vpop.permute.xlu0 %182
    %v185 = vperm.slane %v93, 3
    %v186 = vmul.f32 %v171, %v185
    %v187 = vmul.f32 %v175, %v185
    %v188 = vmul.f32 %v179, %v185
    %v189 = vmul.f32 %v183, %v185
    %v190 = vadd.f32 %v165, %v186
    %v191 = vadd.f32 %v166, %v187
    %v192 = vadd.f32 %v167, %v188
    %v193 = vadd.f32 %v168, %v189
    %v194 = vmax.f32 %v190, 0.0
    %v195 = vmax.f32 %v191, 0.0
    %v196 = vmax.f32 %v192, 0.0
    %v197 = vmax.f32 %v193, 0.0
    %198 = vset.pattern.permute.xlu0 4
    %199 = vperm.xlu0 %198, %v29
    %v200 = vpop.permute.xlu0 %199
    %202 = vset.pattern.permute.xlu0 4
    %203 = vperm.xlu0 %202, %v30
    %v204 = vpop.permute.xlu0 %203
    %206 = vset.pattern.permute.xlu0 4
    %207 = vperm.xlu0 %206, %v31
    %v208 = vpop.permute.xlu0 %207
    %210 = vset.pattern.permute.xlu0 4
    %211 = vperm.xlu0 %210, %v32
    %v212 = vpop.permute.xlu0 %211
    %v214 = vmul.f32 %v200, %v194
    %v215 = vmul.f32 %v204, %v195
    %v216 = vmul.f32 %v208, %v196
    %v217 = vmul.f32 %v212, %v197
    %v218 = vadd.f32 %v214, %v215
    %v219 = vadd.f32 %v218, %v216
    %v220 = vadd.f32 %v219, %v217
    %v221 = vrot.slane %v220, 4
    %v222 = vadd.f32 %v220, %v221
    %v223 = vrot.slane %v222, 2
    %v224 = vadd.f32 %v222, %v223
    %v225 = vrot.slane %v224, 1
    %v226 = vadd.f32 %v224, %v225
    %s227 = sld [smem:[#allocation2 + $0x4]]
    %v228 = vstv %s227
    %v229 = vadd.f32 %v226, %v228
    %v230 = vsub.f32 %v229, %v28
    %v231 = vmul.f32 %v230, %v230
    %v232 = vadd.f32 %v231, 0.0
    %233 = vset.pattern.permute.xlu0 5
    %234 = vperm.xlu0 %233, %v29
    %v235 = vpop.permute.xlu0 %234
    %237 = vset.pattern.permute.xlu0 5
    %238 = vperm.xlu0 %237, %v30
    %v239 = vpop.permute.xlu0 %238
    %241 = vset.pattern.permute.xlu0 5
    %242 = vperm.xlu0 %241, %v31
    %v243 = vpop.permute.xlu0 %242
    %245 = vset.pattern.permute.xlu0 5
    %246 = vperm.xlu0 %245, %v32
    %v247 = vpop.permute.xlu0 %246
    %v249 = vmul.f32 %v235, %v194
    %v250 = vmul.f32 %v239, %v195
    %v251 = vmul.f32 %v243, %v196
    %v252 = vmul.f32 %v247, %v197
    %v253 = vadd.f32 %v249, %v250
    %v254 = vadd.f32 %v253, %v251
    %v255 = vadd.f32 %v254, %v252
    %v256 = vrot.slane %v255, 4
    %v257 = vadd.f32 %v255, %v256
    %v258 = vrot.slane %v257, 2
    %v259 = vadd.f32 %v257, %v258
    %v260 = vrot.slane %v259, 1
    %v261 = vadd.f32 %v259, %v260
    %s262 = sld [smem:[#allocation2 + $0x5]]
    %v263 = vstv %s262
    %v264 = vadd.f32 %v261, %v263
    %v265 = vsub.f32 %v264, %v28
    %v266 = vmul.f32 %v265, %v265
    %v268 = vrot.slane %v266, 1
    %v270 = vadd.f32 %v232, %v268
    %271 = vset.pattern.permute.xlu0 6
    %272 = vperm.xlu0 %271, %v29
    %v273 = vpop.permute.xlu0 %272
    %275 = vset.pattern.permute.xlu0 6
    %276 = vperm.xlu0 %275, %v30
    %v277 = vpop.permute.xlu0 %276
    %279 = vset.pattern.permute.xlu0 6
    %280 = vperm.xlu0 %279, %v31
    %v281 = vpop.permute.xlu0 %280
    %283 = vset.pattern.permute.xlu0 6
    %284 = vperm.xlu0 %283, %v32
    %v285 = vpop.permute.xlu0 %284
    %v287 = vmul.f32 %v273, %v194
    %v288 = vmul.f32 %v277, %v195
    %v289 = vmul.f32 %v281, %v196
    %v290 = vmul.f32 %v285, %v197
    %v291 = vadd.f32 %v287, %v288
    %v292 = vadd.f32 %v291, %v289
    %v293 = vadd.f32 %v292, %v290
    %v294 = vrot.slane %v293, 4
    %v295 = vadd.f32 %v293, %v294
    %v296 = vrot.slane %v295, 2
    %v297 = vadd.f32 %v295, %v296
    %v298 = vrot.slane %v297, 1
    %v299 = vadd.f32 %v297, %v298
    %s300 = sld [smem:[#allocation2 + $0x6]]
    %v301 = vstv %s300
    %v302 = vadd.f32 %v299, %v301
    %v303 = vsub.f32 %v302, %v28
    %v304 = vmul.f32 %v303, %v303
    %v306 = vrot.slane %v304, 2
    %v308 = vadd.f32 %v270, %v306
    %309 = vset.pattern.permute.xlu0 7
    %310 = vperm.xlu0 %309, %v29
    %v311 = vpop.permute.xlu0 %310
    %313 = vset.pattern.permute.xlu0 7
    %314 = vperm.xlu0 %313, %v30
    %v315 = vpop.permute.xlu0 %314
    %317 = vset.pattern.permute.xlu0 7
    %318 = vperm.xlu0 %317, %v31
    %v319 = vpop.permute.xlu0 %318
    %321 = vset.pattern.permute.xlu0 7
    %322 = vperm.xlu0 %321, %v32
    %v323 = vpop.permute.xlu0 %322
    %v325 = vmul.f32 %v311, %v194
    %v326 = vmul.f32 %v315, %v195
    %v327 = vmul.f32 %v319, %v196
    %v328 = vmul.f32 %v323, %v197
    %v329 = vadd.f32 %v325, %v326
    %v330 = vadd.f32 %v329, %v327
    %v331 = vadd.f32 %v330, %v328
    %v332 = vrot.slane %v331, 4
    %v333 = vadd.f32 %v331, %v332
    %v334 = vrot.slane %v333, 2
    %v335 = vadd.f32 %v333, %v334
    %v336 = vrot.slane %v335, 1
    %v337 = vadd.f32 %v335, %v336
    %s338 = sld [smem:[#allocation2 + $0x7]]
    %v339 = vstv %s338
    %v340 = vadd.f32 %v337, %v339
    %v341 = vsub.f32 %v340, %v28
    %v342 = vmul.f32 %v341, %v341
    %v344 = vrot.slane %v342, 3
    %v346 = vadd.f32 %v308, %v344
    %v348 = vrot.slane %v346, 4
    %vm350 = vcmask 1040384
    %v351 = vsel %vm350, %v348, 0.0
    %352 = vadd.xlane.f32.xlu0 %v351
    %v353 = vpop.xlane.xlu0 %352
    %v354 = vrot.slane %v353, 4
    %v355 = vadd.f32 %v353, %v354
    %v356 = vrot.slane %v355, 2
    %v357 = vadd.f32 %v355, %v356
    %v358 = vrot.slane %v357, 1
    %v359 = vadd.f32 %v357, %v358
    %s360 = vtos %v359
    %s361 = scalar_lea.smem [#allocation5], 0
    %362 = sst [smem:[%s361]] %s360
    // Predicated region
    $region18: #{tpu_custom_call.1} parent=1 // pred_check
      _
    $region19: #{tpu_custom_call.1} parent=1 // pred_check_branch
      %364 = sbr.rel (0) target = $region21
    $region20: #{tpu_custom_call.1} parent=1 // pred_region
      %366 = vsyncadd [#allocation3], 0
      %s368 = sshll.u32 %s3, 4
      %s369 = int_to_ptr.hbm [resolvable:$true] %s368
      %371 = dma.smem_to_hbm [#allocation5], 16, %s369, [#allocation3]
    $region21: #{tpu_custom_call.1} parent=1 // pred_fallthru
      _
    // Predicated region
    $region22: #{tpu_custom_call.1} parent=1 // pred_check
      _
    $region23: #{tpu_custom_call.1} parent=1 // pred_check_branch
      %373 = sbr.rel (0) target = $region25
    $region24: #{tpu_custom_call.1} parent=1 // pred_region
      %375 = dma.done [#allocation3], 16
    $region25: #{tpu_custom_call.1} parent=1 // pred_fallthru
      _
    %376 = sfence
    %377 = vsyncpa [#allocation3], 1
    %378 = vsyncpa [#allocation4], 1

</llo_original>
